<compile_context>
chip_gen: v7x
topology: tpu7x:2x2x1
jax: 0.10.0
libtpu: 0.0.40
codegen_flags: <defaults>
</compile_context>

<pallas_src>
import jax
import jax.numpy as jnp
from jax.experimental import pallas as pl
from jax.experimental.pallas import tpu as pltpu

_LANES = 128                     # 64 complex elements per row, interleaved (re, im)
_MAX_TILE_ROWS = 8192            # 4 MiB f32 per block
_VMEM_LIMIT_BYTES = 32 * 1024 * 1024


def _round_up(x, m):
    return (x + m - 1) // m * m


def _num_shards():
    """Leading grid axis: 2 on v7x (two TensorCores per chip), else 1."""
    # TODO(synk): if plain "parallel" does not shard across v7x's two TCs,
    # switch axis 0 to pltpu.CORE_PARALLEL (kept as "parallel" here to avoid
    # lowering risk on 1-TC chips).
    try:
        kind = jax.devices()[0].device_kind.lower()
    except Exception:
        kind = ""
    return 2 if "v7" in kind else 1


_COMPLEX_BITCAST_OK = None


def _complex_bitcast_supported():
    """One-time eager probe: can complex64 be bitcast to interleaved f32 pairs?"""
    global _COMPLEX_BITCAST_OK
    if _COMPLEX_BITCAST_OK is None:
        try:
            probe = jax.lax.bitcast_convert_type(
                jnp.asarray([1.0 + 2.0j], jnp.complex64), jnp.float32)
            probe = jax.block_until_ready(probe)
            _COMPLEX_BITCAST_OK = (
                probe.shape == (1, 2)
                and abs(float(probe[0, 0]) - 1.0) < 1e-6
                and abs(float(probe[0, 1]) - 2.0) < 1e-6)
        except Exception:
            _COMPLEX_BITCAST_OK = False
    return _COMPLEX_BITCAST_OK


def _as_float_pairs(Z):
    """Accept float (..., 2) interleaved inputs or complex inputs."""
    if jnp.iscomplexobj(Z):
        if Z.dtype == jnp.complex64 and _complex_bitcast_supported():
            # complex64 is already interleaved (re, im) f32 in memory: free view.
            return jax.lax.bitcast_convert_type(Z, jnp.float32)
        return jnp.stack([jnp.real(Z), jnp.imag(Z)], axis=-1).astype(jnp.float32)
    return Z.astype(jnp.float32)


def _tloss_kernel(x_ref, y_ref, out_ref, acc_ref):
    step = pl.program_id(1)

    @pl.when(step == 0)
    def _init():
        acc_ref[...] = jnp.zeros_like(acc_ref)

    a = x_ref[...]                       # (T, 128): re, im, re, im, ... along lanes
    b = y_ref[...]
    # Partner value: at even lane 2k this is the imaginary part of element k.
    # Odd lanes hold junk; it stays in odd lanes (all ops are lane-wise) and is
    # masked out once, in the finalize reduce.
    ar = pltpu.roll(a, _LANES - 1, 1)    # ar[:, j] = a[:, (j + 1) % 128]
    br = pltpu.roll(b, _LANES - 1, 1)

    mag2_x = a * a + ar * ar             # |X|^2 (valid at even lanes)
    mag2_y = b * b + br * br             # |Y|^2
    dotp = a * b + ar * br               # Re(X * conj(Y)); sign == sign(cos(angle))
    cross = jnp.abs(a * br - ar * b)     # |xr*yi - xi*yr|

    mag_x = jnp.sqrt(mag2_x)
    mag_y = jnp.sqrt(mag2_y)

    # Exact divide (not approx reciprocal): hidden under HBM on v5e/v6e and it
    # keeps us comfortably within the 1e-5 reference tolerance.
    ploss = cross / (mag_x + 1e-8)
    # aligned <=> cos(angle_X - angle_Y) < 0.  For X != 0 this is exactly
    # Re(X*conj(Y)) < 0; for X == 0 torch's atan2(0, 0) = 0 reduces it to Re(Y) < 0.
    aligned = (dotp < 0.0) | ((mag2_x == 0.0) & (b < 0.0))
    final_term = jnp.where(aligned, 2.0 * mag_y - ploss, ploss)
    diff = mag_x - mag_y
    acc_ref[...] += final_term + diff * diff

    @pl.when(step == pl.num_programs(1) - 1)
    def _finalize():
        lane = jax.lax.broadcasted_iota(jnp.int32, acc_ref.shape, 1)
        valid = jnp.where(lane % 2 == 0, acc_ref[...], 0.0)   # once per shard
        out_ref[...] = jnp.zeros(out_ref.shape, jnp.float32) + jnp.sum(valid)


@jax.jit
def tloss(X, Y):
    """Pallas TPU equivalent of TLoss.forward (returns a scalar)."""
    X = _as_float_pairs(X)
    Y = _as_float_pairs(Y)
    assert X.shape == Y.shape and X.shape[-1] == 2

    n = 1
    for d in X.shape[:-1]:
        n *= d                           # number of complex elements
    m = 2 * n                            # number of f32 scalars

    xf = X.reshape(-1)                   # free reshape, stays interleaved
    yf = Y.reshape(-1)

    shards = _num_shards()
    rows_needed = (m + _LANES - 1) // _LANES
    tile_rows = min(
        _MAX_TILE_ROWS,
        max(8, _round_up((rows_needed + shards - 1) // shards, 8)),
    )
    padded_rows = _round_up(rows_needed, shards * tile_rows)
    steps = padded_rows // (shards * tile_rows)

    pad = padded_rows * _LANES - m
    if pad:
        # Zero complex elements contribute exactly 0 to both sums; m is even,
        # so padding never splits an interleaved (re, im) pair.
        xf = jnp.pad(xf, (0, pad))
        yf = jnp.pad(yf, (0, pad))

    xf = xf.reshape(padded_rows, _LANES)
    yf = yf.reshape(padded_rows, _LANES)

    in_spec = pl.BlockSpec((tile_rows, _LANES), lambda c, i: (c * steps + i, 0))

    out = pl.pallas_call(
        _tloss_kernel,
        out_shape=jax.ShapeDtypeStruct((shards, 8, 128), jnp.float32),
        grid_spec=pltpu.PrefetchScalarGridSpec(
            num_scalar_prefetch=0,
            grid=(shards, steps),
            in_specs=[in_spec, in_spec],
            out_specs=pl.BlockSpec((1, 8, 128), lambda c, i: (c, 0, 0)),
            scratch_shapes=[pltpu.VMEM((tile_rows, _LANES), jnp.float32)],
        ),
        compiler_params=pltpu.CompilerParams(
            dimension_semantics=("parallel", "arbitrary"),
            vmem_limit_bytes=_VMEM_LIMIT_BYTES),
    )(xf, yf)

    partial_sums = out[:, 0, 0]          # one partial per shard
    return jnp.sum(partial_sums) / jnp.float32(n)


def _tloss_ref(X, Y):
    """Pure-JAX reference mirroring the PyTorch forward (trig formulation)."""
    xr, xi = X[..., 0], X[..., 1]
    yr, yi = Y[..., 0], Y[..., 1]
    mag_input = jnp.sqrt(xr * xr + xi * xi)
    mag_target = jnp.sqrt(yr * yr + yi * yi)
    cross = jnp.abs(xr * yi - xi * yr)
    angle = jnp.arctan2(xi, xr) - jnp.arctan2(yi, yr)
    ploss = cross / (mag_input + 1e-8)
    aligned = jnp.cos(angle) < 0
    final_term = jnp.where(aligned, mag_target + (mag_target - ploss), ploss)
    mse = jnp.mean((mag_input - mag_target) ** 2)
    return jnp.mean(final_term + mse)


if __name__ == "__main__":
    key = jax.random.PRNGKey(0)
    k1, k2, k3, k4 = jax.random.split(key, 4)

    # (B, C, H, W, 2): last dim is (real, imag), as torch.view_as_complex expects.
    B, C, H, W = 2, 4, 16, 16
    X = jax.random.normal(k1, (B, C, H, W, 2), dtype=jnp.float32)
    Y = jax.random.normal(k2, (B, C, H, W, 2), dtype=jnp.float32)

    out = jax.block_until_ready(tloss(X, Y))
    ref = _tloss_ref(X, Y)
    assert jnp.allclose(out, ref, rtol=1e-5, atol=1e-5), (out, ref)

    # Ragged shape: exercises the zero-pad / masked-tail path.
    X2 = jax.random.normal(k3, (1, 3, 10, 7, 2), dtype=jnp.float32)
    Y2 = jax.random.normal(k4, (1, 3, 10, 7, 2), dtype=jnp.float32)
    out2 = jax.block_until_ready(tloss(X2, Y2))
    ref2 = _tloss_ref(X2, Y2)
    assert jnp.allclose(out2, ref2, rtol=1e-5, atol=1e-5), (out2, ref2)

    # Complex inputs: exercises the (probed) bitcast fast path / stack fallback.
    Xc = X[..., 0] + 1j * X[..., 1]
    Yc = Y[..., 0] + 1j * Y[..., 1]
    out3 = jax.block_until_ready(tloss(Xc, Yc))
    assert jnp.allclose(out3, ref, rtol=1e-5, atol=1e-5), (out3, ref)

    print("KERNEL_OK")
</pallas_src>

<mosaic_0001>
module attributes {stable_mosaic.version = 11 : i64} {
  func.func @_tloss_kernel(%arg0: i32, %arg1: i32, %arg2: memref<32x128xf32, #tpu.memory_space<vmem>>, %arg3: memref<32x128xf32, #tpu.memory_space<vmem>>, %arg4: memref<1x8x128xf32, #tpu.memory_space<vmem>>, %arg5: memref<32x128xf32, #tpu.memory_space<vmem>>) attributes {dimension_semantics = [#tpu.dimension_semantics<parallel>, #tpu.dimension_semantics<arbitrary>], iteration_bounds = array<i64: 1, 1>, scalar_prefetch = 0 : i64, scratch_operands = 1 : i64, tpu.core_type = #tpu.core_type<tc>, window_params = [{transform_indices = @transform_0, window_bounds = array<i64: 32, 128>}, {transform_indices = @transform_1, window_bounds = array<i64: 32, 128>}, {transform_indices = @transform_2, window_bounds = array<i64: 1, 8, 128>}]} {
    %c0_i32 = arith.constant 0 : i32
    %0 = arith.cmpi eq, %arg1, %c0_i32 : i32
    %1 = arith.extui %0 : i1 to i32
    %c0_i32_0 = arith.constant 0 : i32
    %2 = arith.cmpi ne, %1, %c0_i32_0 : i32
    scf.if %2 {
      %cst_15 = arith.constant 0.000000e+00 : f32
      %46 = vector.broadcast %cst_15 : f32 to vector<32x128xf32>
      %c0_16 = arith.constant 0 : index
      %c0_17 = arith.constant 0 : index
      %47 = vector.load %arg5[%c0_16, %c0_17] : memref<32x128xf32, #tpu.memory_space<vmem>>, vector<32x128xf32>
      tpu.vector_store %arg5[%c0_16, %c0_17], %46 {strides = array<i32>} : memref<32x128xf32, #tpu.memory_space<vmem>>, vector<32x128xf32>,
    } else {
    }
    %c0 = arith.constant 0 : index
    %c0_1 = arith.constant 0 : index
    %3 = vector.load %arg2[%c0, %c0_1] : memref<32x128xf32, #tpu.memory_space<vmem>>, vector<32x128xf32>
    %c0_2 = arith.constant 0 : index
    %c0_3 = arith.constant 0 : index
    %4 = vector.load %arg3[%c0_2, %c0_3] : memref<32x128xf32, #tpu.memory_space<vmem>>, vector<32x128xf32>
    %c127_i32 = arith.constant 127 : i32
    %5 = tpu.dynamic_rotate %3 by %c127_i32 dim 1 : vector<32x128xf32>, i32 -> vector<32x128xf32>
    %c127_i32_4 = arith.constant 127 : i32
    %6 = tpu.dynamic_rotate %4 by %c127_i32_4 dim 1 : vector<32x128xf32>, i32 -> vector<32x128xf32>
    %7 = arith.mulf %3, %3 : vector<32x128xf32>
    %8 = arith.mulf %5, %5 : vector<32x128xf32>
    %9 = arith.addf %7, %8 : vector<32x128xf32>
    %10 = arith.mulf %4, %4 : vector<32x128xf32>
    %11 = arith.mulf %6, %6 : vector<32x128xf32>
    %12 = arith.addf %10, %11 : vector<32x128xf32>
    %13 = arith.mulf %3, %4 : vector<32x128xf32>
    %14 = arith.mulf %5, %6 : vector<32x128xf32>
    %15 = arith.addf %13, %14 : vector<32x128xf32>
    %16 = arith.mulf %3, %6 : vector<32x128xf32>
    %17 = arith.mulf %5, %4 : vector<32x128xf32>
    %18 = arith.subf %16, %17 : vector<32x128xf32>
    %19 = math.absf %18 : vector<32x128xf32>
    %20 = math.sqrt %9 : vector<32x128xf32>
    %21 = math.sqrt %12 : vector<32x128xf32>
    %cst = arith.constant 9.99999993E-9 : f32
    %22 = vector.broadcast %cst : f32 to vector<32x128xf32>
    %23 = arith.addf %20, %22 : vector<32x128xf32>
    %24 = arith.divf %19, %23 : vector<32x128xf32>
    %cst_5 = arith.constant 0.000000e+00 : f32
    %25 = vector.broadcast %cst_5 : f32 to vector<32x128xf32>
    %26 = arith.cmpf olt, %15, %25 : vector<32x128xf32>
    %cst_6 = arith.constant 0.000000e+00 : f32
    %27 = vector.broadcast %cst_6 : f32 to vector<32x128xf32>
    %28 = arith.cmpf oeq, %9, %27 : vector<32x128xf32>
    %cst_7 = arith.constant 0.000000e+00 : f32
    %29 = vector.broadcast %cst_7 : f32 to vector<32x128xf32>
    %30 = arith.cmpf olt, %4, %29 : vector<32x128xf32>
    %31 = arith.andi %28, %30 : vector<32x128xi1>
    %32 = arith.ori %26, %31 : vector<32x128xi1>
    %cst_8 = arith.constant 2.000000e+00 : f32
    %33 = vector.broadcast %cst_8 : f32 to vector<32x128xf32>
    %34 = arith.mulf %33, %21 : vector<32x128xf32>
    %35 = arith.subf %34, %24 : vector<32x128xf32>
    %36 = arith.select %32, %35, %24 : vector<32x128xi1>, vector<32x128xf32>
    %37 = arith.subf %20, %21 : vector<32x128xf32>
    %c0_9 = arith.constant 0 : index
    %c0_10 = arith.constant 0 : index
    %38 = vector.load %arg5[%c0_9, %c0_10] : memref<32x128xf32, #tpu.memory_space<vmem>>, vector<32x128xf32>
    %39 = arith.mulf %37, %37 : vector<32x128xf32>
    %40 = arith.addf %36, %39 : vector<32x128xf32>
    %41 = arith.addf %38, %40 : vector<32x128xf32>
    %c0_11 = arith.constant 0 : index
    %c0_12 = arith.constant 0 : index
    %42 = vector.load %arg5[%c0_11, %c0_12] : memref<32x128xf32, #tpu.memory_space<vmem>>, vector<32x128xf32>
    tpu.vector_store %arg5[%c0_11, %c0_12], %41 {strides = array<i32>} : memref<32x128xf32, #tpu.memory_space<vmem>>, vector<32x128xf32>,
    %c0_i32_13 = arith.constant 0 : i32
    %43 = arith.cmpi eq, %arg1, %c0_i32_13 : i32
    %44 = arith.extui %43 : i1 to i32
    %c0_i32_14 = arith.constant 0 : i32
    %45 = arith.cmpi ne, %44, %c0_i32_14 : i32
    scf.if %45 {
      %46 = tpu.iota {dimensions = array<i32: 1>} : vector<32x128xi32>
      %c2_i32 = arith.constant 2 : i32
      %c0_i32_15 = arith.constant 0 : i32
      %47 = arith.cmpi eq, %c2_i32, %c0_i32_15 : i32
      %c1_i32 = arith.constant 1 : i32
      %48 = arith.select %47, %c1_i32, %c2_i32 : i32
      %49 = vector.broadcast %48 : i32 to vector<32x128xi32>
      %50 = arith.remsi %46, %49 : vector<32x128xi32>
      %c0_i32_16 = arith.constant 0 : i32
      %51 = vector.broadcast %c0_i32_16 : i32 to vector<32x128xi32>
      %52 = arith.cmpi ne, %50, %51 : vector<32x128xi32>
      %c0_i32_17 = arith.constant 0 : i32
      %53 = vector.broadcast %c0_i32_17 : i32 to vector<32x128xi32>
      %54 = arith.cmpi slt, %50, %53 : vector<32x128xi32>
      %c0_i32_18 = arith.constant 0 : i32
      %55 = arith.cmpi slt, %48, %c0_i32_18 : i32
      %56 = vector.broadcast %55 : i1 to vector<32x128xi1>
      %57 = vector.broadcast %56 : vector<32x128xi1> to vector<32x128xi1>
      %58 = arith.xori %54, %57 : vector<32x128xi1>
      %59 = arith.andi %58, %52 : vector<32x128xi1>
      %60 = vector.broadcast %48 : i32 to vector<32x128xi32>
      %61 = arith.addi %50, %60 : vector<32x128xi32>
      %62 = arith.select %59, %61, %50 : vector<32x128xi1>, vector<32x128xi32>
      %c0_i32_19 = arith.constant 0 : i32
      %63 = vector.broadcast %c0_i32_19 : i32 to vector<32x128xi32>
      %64 = arith.cmpi eq, %62, %63 : vector<32x128xi32>
      %c0_20 = arith.constant 0 : index
      %c0_21 = arith.constant 0 : index
      %65 = vector.load %arg5[%c0_20, %c0_21] : memref<32x128xf32, #tpu.memory_space<vmem>>, vector<32x128xf32>
      %cst_22 = arith.constant 0.000000e+00 : f32
      %66 = vector.broadcast %cst_22 : f32 to vector<32x128xf32>
      %67 = arith.select %64, %65, %66 : vector<32x128xi1>, vector<32x128xf32>
      %cst_23 = arith.constant 0.000000e+00 : f32
      %68 = vector.broadcast %cst_23 : f32 to vector<1x8x128xf32>
      %69 = vector.shape_cast %67 : vector<32x128xf32> to vector<1x32x128xf32>
      %cst_24 = arith.constant dense<0.000000e+00> : vector<1xf32>
      %70 = vector.multi_reduction <add>, %69, %cst_24 [1, 2] : vector<1x32x128xf32> to vector<1xf32>
      %71 = vector.shape_cast %70 : vector<1xf32> to vector<1x1x1xf32>
      %72 = vector.extract %71[0, 0, 0] : f32 from vector<1x1x1xf32>
      %73 = vector.broadcast %72 : f32 to vector<1x8x128xf32>
      %74 = arith.addf %68, %73 : vector<1x8x128xf32>
      %c0_25 = arith.constant 0 : index
      %c0_26 = arith.constant 0 : index
      %c0_27 = arith.constant 0 : index
      %75 = vector.load %arg4[%c0_25, %c0_26, %c0_27] : memref<1x8x128xf32, #tpu.memory_space<vmem>>, vector<1x8x128xf32>
      tpu.vector_store %arg4[%c0_25, %c0_26, %c0_27], %74 {strides = array<i32>} : memref<1x8x128xf32, #tpu.memory_space<vmem>>, vector<1x8x128xf32>,
    } else {
    }
    return
  }
  func.func @transform_0(%arg0: i32, %arg1: i32) -> (i32, i32) {
    %c1_i32 = arith.constant 1 : i32
    %0 = arith.muli %arg0, %c1_i32 : i32
    %1 = arith.addi %0, %arg1 : i32
    %c0_i32 = arith.constant 0 : i32
    %c0_i32_0 = arith.constant 0 : i32
    return %1, %c0_i32 : i32, i32
  }
  func.func @transform_1(%arg0: i32, %arg1: i32) -> (i32, i32) {
    %c1_i32 = arith.constant 1 : i32
    %0 = arith.muli %arg0, %c1_i32 : i32
    %1 = arith.addi %0, %arg1 : i32
    %c0_i32 = arith.constant 0 : i32
    %c0_i32_0 = arith.constant 0 : i32
    return %1, %c0_i32 : i32, i32
  }
  func.func @transform_2(%arg0: i32, %arg1: i32) -> (i32, i32, i32) {
    %c0_i32 = arith.constant 0 : i32
    %c0_i32_0 = arith.constant 0 : i32
    %c0_i32_1 = arith.constant 0 : i32
    return %arg0, %c0_i32, %c0_i32_0 : i32, i32, i32
  }
}

</mosaic_0001>

<llo_original>
// kernel: tloss.1
$region0: #{tloss.1}
  #allocation0 [shape = 'u32[]', space=smem, size = 0x4, offset = 0x4, fixed_abs, tag = 'smem constant byte address 0x4 - core index']
  #allocation1 [shape = 'u32[144,128]{1,0:T(1,128)}', space=vmem, size = 0x12000, scoped, tag = 'internal scratch']
  #allocation2 [shape = 'f32[32,128]{1,0:T(8,128)}', space=vmem, size = 0x4000, scoped, tag = 'scratch operand']
  %s0 = inlined_call_operand.vmem [shape: f32[32,128], index: 0, kind: input, shape index: {}]
  %s1 = inlined_call_operand.vmem [shape: f32[32,128], index: 1, kind: input, shape index: {}]
  %s2 = inlined_call_operand.vmem [shape: f32[1,8,128], index: 2, kind: output, shape index: {}]
  %s3 = sld [smem:[#allocation0]]
  $region26: #{tloss.1} parent=0
    _
  %s5 = ssub.s32 1, %s3
  %s6 = scalar_select 0, %s5, %s3
  // Predicated region
  $region2: #{tloss.1} parent=0 // pred_check
    _
  $region3: #{tloss.1} parent=0 // pred_check_branch
    %8 = sbr.rel (0) target = $region5
  $region4: #{tloss.1} parent=0 // pred_region
    %s9 = sadd.s32 0, 0
    %s10 = smul.u32 4, %s9
    %p11 = scmp.lt.s32.totalorder %s10, 3
    %s12 = scalar_select %p11, %s10, 3
    %s13 = smul.addr %s12, 8
    %s14 = scalar_lea.vmem %s0, %s13
    %s15 = sadd.s32 0, 0
    %s16 = smul.u32 4, %s15
  $region5: #{tloss.1} parent=0 // pred_fallthru
    _
  // Predicated region
  $region6: #{tloss.1} parent=0 // pred_check
    _
  $region7: #{tloss.1} parent=0 // pred_check_branch
    %18 = sbr.rel (0) target = $region9
  $region8: #{tloss.1} parent=0 // pred_region
    %s19 = sadd.s32 0, 0
    %s20 = smul.u32 4, %s19
    %p21 = scmp.lt.s32.totalorder %s20, 3
    %s22 = scalar_select %p21, %s20, 3
    %s23 = smul.addr %s22, 8
    %s24 = scalar_lea.vmem %s1, %s23
    %s25 = sadd.s32 0, 0
    %s26 = smul.u32 4, %s25
  $region9: #{tloss.1} parent=0 // pred_fallthru
    _
  %s27 = sadd.s32 0, 0
  %s28 = smul.u32 4, %s27
  %p29 = scmp.lt.s32.totalorder %s28, 3
  %s30 = scalar_select %p29, %s28, 3
  %s31 = smul.addr %s30, 8
  %s32 = scalar_lea.vmem %s0, %s31
  %s33 = sadd.s32 0, 0
  %s34 = smul.u32 4, %s33
  %p35 = scmp.lt.s32.totalorder %s34, 3
  %s36 = scalar_select %p35, %s34, 3
  %s37 = smul.addr %s36, 8
  %s38 = scalar_lea.vmem %s1, %s37
  %s39 = sadd.s32 0, 0
  %s40 = smul.u32 4, %s39
  %p41 = scmp.lt.s32.totalorder %s40, 3
  %s42 = scalar_select %p41, %s40, 3
  %s43 = smul.addr %s42, 8
  %s44 = scalar_lea.vmem %s0, %s43
  %s45 = sadd.s32 0, 0
  %s46 = smul.u32 4, %s45
  %s47 = sadd.s32 0, 0
  %s48 = smul.u32 4, %s47
  %p49 = scmp.lt.s32.totalorder %s48, 3
  %s50 = scalar_select %p49, %s48, 3
  %s51 = smul.addr %s50, 8
  %s52 = scalar_lea.vmem %s1, %s51
  %s53 = sadd.s32 0, 0
  %s54 = smul.u32 4, %s53
  %p55 = scmp.eq.s32.totalorder 0, 0
  // Predicated region
  $region10: #{tloss.1} parent=0 // pred_check
    %p56 = pneg %p55
  $region11: #{tloss.1} parent=0 // pred_check_branch
    %58 = sbr.rel (%p56) target = $region13
  $region12: #{tloss.1} parent=0 // pred_region
    %59 = vst [vmem:[#allocation2] sm:$0xff] 0.0
    %60 = vst [vmem:[#allocation2 + $0x8] sm:$0xff] 0.0
    %61 = vst [vmem:[#allocation2 + $0x10] sm:$0xff] 0.0
    %62 = vst [vmem:[#allocation2 + $0x18] sm:$0xff] 0.0
  $region13: #{tloss.1} parent=0 // pred_fallthru
    _
  %v63 = vld [vmem:[%s44] sm:$0xff]
  %v64 = vld [vmem:[%s44 + $0x8] sm:$0xff]
  %v65 = vld [vmem:[%s44 + $0x10] sm:$0xff]
  %v66 = vld [vmem:[%s44 + $0x18] sm:$0xff]
  %v67 = vld [vmem:[%s52] sm:$0xff]
  %v68 = vld [vmem:[%s52 + $0x8] sm:$0xff]
  %v69 = vld [vmem:[%s52 + $0x10] sm:$0xff]
  %v70 = vld [vmem:[%s52 + $0x18] sm:$0xff]
  %71 = vrot.lane.b32.xlu0 %v63, 127
  %v72 = vpop.permute.xlu0 %71
  %73 = vrot.lane.b32.xlu0 %v64, 127
  %v74 = vpop.permute.xlu0 %73
  %75 = vrot.lane.b32.xlu0 %v65, 127
  %v76 = vpop.permute.xlu0 %75
  %77 = vrot.lane.b32.xlu0 %v66, 127
  %v78 = vpop.permute.xlu0 %77
  %79 = vrot.lane.b32.xlu0 %v67, 127
  %v80 = vpop.permute.xlu0 %79
  %81 = vrot.lane.b32.xlu0 %v68, 127
  %v82 = vpop.permute.xlu0 %81
  %83 = vrot.lane.b32.xlu0 %v69, 127
  %v84 = vpop.permute.xlu0 %83
  %85 = vrot.lane.b32.xlu0 %v70, 127
  %v86 = vpop.permute.xlu0 %85
  %v87 = vmul.f32 %v63, %v63
  %v88 = vmul.f32 %v64, %v64
  %v89 = vmul.f32 %v65, %v65
  %v90 = vmul.f32 %v66, %v66
  %v91 = vmul.f32 %v72, %v72
  %v92 = vmul.f32 %v74, %v74
  %v93 = vmul.f32 %v76, %v76
  %v94 = vmul.f32 %v78, %v78
  %v95 = vadd.f32 %v87, %v91
  %v96 = vadd.f32 %v88, %v92
  %v97 = vadd.f32 %v89, %v93
  %v98 = vadd.f32 %v90, %v94
  %v99 = vmul.f32 %v67, %v67
  %v100 = vmul.f32 %v68, %v68
  %v101 = vmul.f32 %v69, %v69
  %v102 = vmul.f32 %v70, %v70
  %v103 = vmul.f32 %v80, %v80
  %v104 = vmul.f32 %v82, %v82
  %v105 = vmul.f32 %v84, %v84
  %v106 = vmul.f32 %v86, %v86
  %v107 = vadd.f32 %v99, %v103
  %v108 = vadd.f32 %v100, %v104
  %v109 = vadd.f32 %v101, %v105
  %v110 = vadd.f32 %v102, %v106
  %v111 = vmul.f32 %v63, %v67
  %v112 = vmul.f32 %v64, %v68
  %v113 = vmul.f32 %v65, %v69
  %v114 = vmul.f32 %v66, %v70
  %v115 = vmul.f32 %v72, %v80
  %v116 = vmul.f32 %v74, %v82
  %v117 = vmul.f32 %v76, %v84
  %v118 = vmul.f32 %v78, %v86
  %v119 = vadd.f32 %v111, %v115
  %v120 = vadd.f32 %v112, %v116
  %v121 = vadd.f32 %v113, %v117
  %v122 = vadd.f32 %v114, %v118
  %v123 = vmul.f32 %v63, %v80
  %v124 = vmul.f32 %v64, %v82
  %v125 = vmul.f32 %v65, %v84
  %v126 = vmul.f32 %v66, %v86
  %v127 = vmul.f32 %v72, %v67
  %v128 = vmul.f32 %v74, %v68
  %v129 = vmul.f32 %v76, %v69
  %v130 = vmul.f32 %v78, %v70
  %v131 = vsub.f32 %v123, %v127
  %v132 = vsub.f32 %v124, %v128
  %v133 = vsub.f32 %v125, %v129
  %v134 = vsub.f32 %v126, %v130
  %v135 = vand.u32 2147483647, %v131
  %v136 = vand.u32 2147483647, %v132
  %v137 = vand.u32 2147483647, %v133
  %v138 = vand.u32 2147483647, %v134
  %v139 = vrsqrt.pop %v95
  %v140 = vmul.f32 %v95, %v139
  %vm141 = vcmp.eq.f32.partialorder %v95, inf
  %v142 = vsel %vm141, %v95, %v140
  %vm143 = vcmp.eq.f32.partialorder %v95, 0.0
  %v144 = vand.u32 %v95, 2147483648
  %v145 = vsel %vm143, %v144, %v142
  %v146 = vrsqrt.pop %v96
  %v147 = vmul.f32 %v96, %v146
  %vm148 = vcmp.eq.f32.partialorder %v96, inf
  %v149 = vsel %vm148, %v96, %v147
  %vm150 = vcmp.eq.f32.partialorder %v96, 0.0
  %v151 = vand.u32 %v96, 2147483648
  %v152 = vsel %vm150, %v151, %v149
  %v153 = vrsqrt.pop %v97
  %v154 = vmul.f32 %v97, %v153
  %vm155 = vcmp.eq.f32.partialorder %v97, inf
  %v156 = vsel %vm155, %v97, %v154
  %vm157 = vcmp.eq.f32.partialorder %v97, 0.0
  %v158 = vand.u32 %v97, 2147483648
  %v159 = vsel %vm157, %v158, %v156
  %v160 = vrsqrt.pop %v98
  %v161 = vmul.f32 %v98, %v160
  %vm162 = vcmp.eq.f32.partialorder %v98, inf
  %v163 = vsel %vm162, %v98, %v161
  %vm164 = vcmp.eq.f32.partialorder %v98, 0.0
  %v165 = vand.u32 %v98, 2147483648
  %v166 = vsel %vm164, %v165, %v163
  %v167 = vrsqrt.pop %v107
  %v168 = vmul.f32 %v107, %v167
  %vm169 = vcmp.eq.f32.partialorder %v107, inf
  %v170 = vsel %vm169, %v107, %v168
  %vm171 = vcmp.eq.f32.partialorder %v107, 0.0
  %v172 = vand.u32 %v107, 2147483648
  %v173 = vsel %vm171, %v172, %v170
  %v174 = vrsqrt.pop %v108
  %v175 = vmul.f32 %v108, %v174
  %vm176 = vcmp.eq.f32.partialorder %v108, inf
  %v177 = vsel %vm176, %v108, %v175
  %vm178 = vcmp.eq.f32.partialorder %v108, 0.0
  %v179 = vand.u32 %v108, 2147483648
  %v180 = vsel %vm178, %v179, %v177
  %v181 = vrsqrt.pop %v109
  %v182 = vmul.f32 %v109, %v181
  %vm183 = vcmp.eq.f32.partialorder %v109, inf
  %v184 = vsel %vm183, %v109, %v182
  %vm185 = vcmp.eq.f32.partialorder %v109, 0.0
  %v186 = vand.u32 %v109, 2147483648
  %v187 = vsel %vm185, %v186, %v184
  %v188 = vrsqrt.pop %v110
  %v189 = vmul.f32 %v110, %v188
  %vm190 = vcmp.eq.f32.partialorder %v110, inf
  %v191 = vsel %vm190, %v110, %v189
  %vm192 = vcmp.eq.f32.partialorder %v110, 0.0
  %v193 = vand.u32 %v110, 2147483648
  %v194 = vsel %vm192, %v193, %v191
  %v195 = vadd.f32 %v145, 1e-08
  %v196 = vadd.f32 %v152, 1e-08
  %v197 = vadd.f32 %v159, 1e-08
  %v198 = vadd.f32 %v166, 1e-08
  %v199 = vrcp.pop %v195
  %v200 = vmul.f32 %v135, %v199
  %v201 = vrcp.pop %v196
  %v202 = vmul.f32 %v136, %v201
  %v203 = vrcp.pop %v197
  %v204 = vmul.f32 %v137, %v203
  %v205 = vrcp.pop %v198
  %v206 = vmul.f32 %v138, %v205
  %vm207 = vcmp.lt.f32.partialorder %v119, 0.0
  %vm208 = vcmp.lt.f32.partialorder %v120, 0.0
  %vm209 = vcmp.lt.f32.partialorder %v121, 0.0
  %vm210 = vcmp.lt.f32.partialorder %v122, 0.0
  %vm211 = vcmp.eq.f32.partialorder %v95, 0.0
  %vm212 = vcmp.eq.f32.partialorder %v96, 0.0
  %vm213 = vcmp.eq.f32.partialorder %v97, 0.0
  %vm214 = vcmp.eq.f32.partialorder %v98, 0.0
  %vm215 = vcmp.lt.f32.partialorder %v67, 0.0
  %vm216 = vcmp.lt.f32.partialorder %v68, 0.0
  %vm217 = vcmp.lt.f32.partialorder %v69, 0.0
  %vm218 = vcmp.lt.f32.partialorder %v70, 0.0
  %vm219 = vmand %vm211, %vm215
  %vm220 = vmand %vm212, %vm216
  %vm221 = vmand %vm213, %vm217
  %vm222 = vmand %vm214, %vm218
  %vm223 = vmor %vm207, %vm219
  %vm224 = vmor %vm208, %vm220
  %vm225 = vmor %vm209, %vm221
  %vm226 = vmor %vm210, %vm222
  %v227 = vmul.f32 %v173, 2.0
  %v228 = vmul.f32 %v180, 2.0
  %v229 = vmul.f32 %v187, 2.0
  %v230 = vmul.f32 %v194, 2.0
  %v231 = vsub.f32 %v227, %v200
  %v232 = vsub.f32 %v228, %v202
  %v233 = vsub.f32 %v229, %v204
  %v234 = vsub.f32 %v230, %v206
  %v235 = vsel %vm223, %v231, %v200
  %v236 = vsel %vm224, %v232, %v202
  %v237 = vsel %vm225, %v233, %v204
  %v238 = vsel %vm226, %v234, %v206
  %v239 = vsub.f32 %v145, %v173
  %v240 = vsub.f32 %v152, %v180
  %v241 = vsub.f32 %v159, %v187
  %v242 = vsub.f32 %v166, %v194
  %v243 = vld [vmem:[#allocation2] sm:$0xff]
  %v244 = vld [vmem:[#allocation2 + $0x8] sm:$0xff]
  %v245 = vld [vmem:[#allocation2 + $0x10] sm:$0xff]
  %v246 = vld [vmem:[#allocation2 + $0x18] sm:$0xff]
  %v247 = vmul.f32 %v239, %v239
  %v248 = vmul.f32 %v240, %v240
  %v249 = vmul.f32 %v241, %v241
  %v250 = vmul.f32 %v242, %v242
  %v251 = vadd.f32 %v235, %v247
  %v252 = vadd.f32 %v236, %v248
  %v253 = vadd.f32 %v237, %v249
  %v254 = vadd.f32 %v238, %v250
  %v255 = vadd.f32 %v243, %v251
  %v256 = vadd.f32 %v244, %v252
  %v257 = vadd.f32 %v245, %v253
  %v258 = vadd.f32 %v246, %v254
  %259 = vst [vmem:[#allocation2] sm:$0xff] %v255
  %260 = vst [vmem:[#allocation2 + $0x8] sm:$0xff] %v256
  %261 = vst [vmem:[#allocation2 + $0x10] sm:$0xff] %v257
  %262 = vst [vmem:[#allocation2 + $0x18] sm:$0xff] %v258
  // Predicated region
  $region14: #{tloss.1} parent=0 // pred_check
    %p263 = pneg %p55
  $region15: #{tloss.1} parent=0 // pred_check_branch
    %265 = sbr.rel (%p263) target = $region17
  $region16: #{tloss.1} parent=0 // pred_region
    %v266 = vlaneseq
    %v267 = vand.u32 %v266, 127
    %vm268 = vcmp.lt.s32.totalorder %v267, 0
    %v269 = vsub.s32 0, %v267
    %v270 = vsel %vm268, %v269, %v267
    %v271 = vshrl.u32 %v270, 1
    %v272 = vand.u32 %v270, 1
    %v273 = vsub.s32 0, %v272
    %v274 = vsel %vm268, %v273, %v272
    %vm275 = vcmp.ne.s32.totalorder %v274, 0
    %vm276 = vcmp.lt.s32.totalorder %v274, 0
    %vm277 = vmand %vm276, %vm275
    %v278 = vadd.s32 %v274, 2
    %v279 = vsel %vm277, %v278, %v274
    %vm280 = vcmp.eq.s32.totalorder %v279, 0
    %v281 = vld [vmem:[#allocation2] sm:$0xff]
    %v282 = vld [vmem:[#allocation2 + $0x8] sm:$0xff]
    %v283 = vld [vmem:[#allocation2 + $0x10] sm:$0xff]
    %v284 = vld [vmem:[#allocation2 + $0x18] sm:$0xff]
    %v285 = vsel %vm280, %v281, 0.0
    %v286 = vsel %vm280, %v282, 0.0
    %v287 = vsel %vm280, %v283, 0.0
    %v288 = vsel %vm280, %v284, 0.0
    %v289 = vadd.f32 %v285, %v286
    %v290 = vadd.f32 %v289, %v287
    %v291 = vadd.f32 %v290, %v288
    %292 = vadd.xlane.f32.xlu0 %v291
    %v293 = vpop.xlane.xlu0 %292
    %v294 = vrot.slane %v293, 4
    %v295 = vadd.f32 %v293, %v294
    %v296 = vrot.slane %v295, 2
    %v297 = vadd.f32 %v295, %v296
    %v298 = vrot.slane %v297, 1
    %v299 = vadd.f32 %v297, %v298
    %s300 = vtos %v299
    %v301 = vstv %s300
    %v302 = vadd.f32 %v301, 0.0
    %303 = vst [vmem:[%s2] sm:$0xff] %v302
  $region17: #{tloss.1} parent=0 // pred_fallthru
    _
  // Predicated region
  $region18: #{tloss.1} parent=0 // pred_check
    _
  $region19: #{tloss.1} parent=0 // pred_check_branch
    %305 = sbr.rel (0) target = $region21
  $region20: #{tloss.1} parent=0 // pred_region
    _
  $region21: #{tloss.1} parent=0 // pred_fallthru
    _
  // Predicated region
  $region22: #{tloss.1} parent=0 // pred_check
    _
  $region23: #{tloss.1} parent=0 // pred_check_branch
    %307 = sbr.rel (0) target = $region25
  $region24: #{tloss.1} parent=0 // pred_region
    _
  $region25: #{tloss.1} parent=0 // pred_fallthru
    _

</llo_original>
